<compile_context>
chip_gen: v5e
topology: v5e:2x2
jax: 0.10.0
libtpu: 0.0.40
codegen_flags: <defaults>
</compile_context>

<pallas_src>
import itertools

import jax
import jax.numpy as jnp
from jax.experimental import pallas as pl
from jax.experimental.pallas import tpu as pltpu

LANE = 128


def _round_up(x, m):
    return (x + m - 1) // m * m


def _pad2d(x, rows, cols):
    return jnp.pad(x, ((0, rows - x.shape[0]), (0, cols - x.shape[1])))


def _pick_row_tile(n_pad):
    # n_pad is a multiple of 8.  Target 256-row tiles (amortizes per-step overhead
    # and matches the v6e/v7x MXU row side); any multiple of 8 that divides n_pad
    # keeps every load/store sublane-dense and the grid exact.  v5e is already
    # saturated at 128 rows but 256 costs nothing there either.
    if n_pad <= 256:
        return n_pad
    tm = 8
    for t in range(8, 257, 8):
        if n_pad % t == 0:
            tm = t
    return tm


def _pick_hw_tile(hw, c, tm, budget_bytes=4 * 1024 * 1024):
    # Chunk the spatial axis only when the [tm, C, hw_tile] f32 input block would
    # exceed the per-buffer VMEM budget (matters on v7x's 64 MiB at real backbone
    # resolutions); chunks must be multiples of 128 lanes.  No-op at small HW.
    if hw % 128 != 0 or tm * c * hw * 4 <= budget_bytes:
        return hw
    best = 128
    for t in range(128, hw + 1, 128):
        if hw % t == 0 and tm * c * t * 4 <= budget_bytes:
            best = t
    return best


def _resident_spec(shape, index_map):
    # Grid-invariant (weight/bias) blocks: single-buffer them so the default
    # double-buffering does not duplicate them in VMEM (v7x has half the VMEM of
    # v5e/v6e).  Falls back to the default pipeline mode on older jax.
    buffered = getattr(pl, "Buffered", None)
    if buffered is not None:
        try:
            return pl.BlockSpec(shape, index_map, pipeline_mode=buffered(1))
        except TypeError:
            pass
    return pl.BlockSpec(shape, index_map)


# ----------------------------- fused Pallas kernel ---------------------------


def _make_kernel(inv_hw):
    def kernel(x_ref, wb_ref, bb_ref, wh_ref, bh_ref, o_ref, pool_ref):
        # x_ref   : [TM, C, HW_TILE] f32 crop rows (one spatial chunk)
        # wb_ref  : [C, DP]  bf16 backbone projection (lane-padded)
        # bb_ref  : [1, DP]  f32  backbone bias
        # wh_ref  : [DP, OP] bf16 head projection (lane-padded)
        # bh_ref  : [1, OP]  f32  head bias
        # o_ref   : [TM, OP] f32  lane-dense padded output
        # pool_ref: [TM, C]  f32  scratch: global-avg-pool accumulator
        s = pl.program_id(1)

        @pl.when(s == 0)
        def _():
            pool_ref[...] = jnp.zeros_like(pool_ref)

        # Partial spatial sum on the XLU (rides a free slot next to the MXU dots);
        # the pooled features never leave VMEM.
        pool_ref[...] += jnp.sum(x_ref[...], axis=-1)

        @pl.when(s == pl.num_programs(1) - 1)
        def _():
            # mean = sum / HW (f32), then bf16 operands into the MXU with f32 acc.
            pooled = (pool_ref[...] * inv_hw).astype(jnp.bfloat16)        # [TM, C]
            feat = jnp.dot(pooled, wb_ref[...],
                           preferred_element_type=jnp.float32) + bb_ref[...]
            out = jnp.dot(feat.astype(jnp.bfloat16), wh_ref[...],
                          preferred_element_type=jnp.float32) + bh_ref[...]
            o_ref[...] = out

    return kernel


def fused_pool_backbone_head(x, wb, bb, wh, bh):
    """[N_pad, C, HW] --(avg-pool + backbone + head, one fused kernel)--> [N_pad, OP]."""
    n_pad, c, hw = x.shape
    dp = wb.shape[1]
    op = wh.shape[1]
    tm = _pick_row_tile(n_pad)
    hw_tile = _pick_hw_tile(hw, c, tm)
    grid = (n_pad // tm, hw // hw_tile)

    cost = pl.CostEstimate(
        flops=n_pad * c * hw + 2 * n_pad * c * dp + 2 * n_pad * dp * op,
        transcendentals=0,
        bytes_accessed=4 * n_pad * c * hw + 2 * (c * dp + dp * op)
        + 4 * (dp + op) + 4 * n_pad * op,
    )

    # Explicit VMEM budget: double-buffered in/out blocks + single-buffered
    # resident weights + pool scratch, with 2x headroom, capped at v7x physical.
    x_blk = tm * c * hw_tile * 4
    o_blk = tm * op * 4
    w_bytes = 2 * (c * dp + dp * op) + 4 * (dp + op)
    vmem_need = 2 * x_blk + 2 * o_blk + w_bytes + tm * LANE * 4
    vmem_limit = int(min(64 * 1024 * 1024, max(4 * 1024 * 1024, 2 * vmem_need)))

    const_map = lambda i, s: (0, 0)
    kernel = _make_kernel(1.0 / float(hw))

    return pl.pallas_call(
        kernel,
        out_shape=jax.ShapeDtypeStruct((n_pad, op), jnp.float32),
        grid=grid,
        in_specs=[
            pl.BlockSpec((tm, c, hw_tile), lambda i, s: (i, 0, s)),  # row/HW tiled
            _resident_spec((c, dp), const_map),                      # VMEM-resident
            _resident_spec((1, dp), const_map),
            _resident_spec((dp, op), const_map),
            _resident_spec((1, op), const_map),
        ],
        out_specs=pl.BlockSpec((tm, op), lambda i, s: (i, 0)),
        scratch_shapes=[pltpu.VMEM((tm, c), jnp.float32)],
        compiler_params=pltpu.CompilerParams(
            # Row axis shards across v7x's 2 TCs once the grouped grid has >1 step;
            # harmless no-op when it has a single step.  HW axis is a reduction.
            dimension_semantics=("parallel", "arbitrary"),
            vmem_limit_bytes=vmem_limit,
        ),
        cost_estimate=cost,
    )(x, wb, bb, wh, bh)


# --------------------------- MultiCropWrapper -------------------------------


class MultiCropWrapper:
    """JAX/Pallas port of conduit's MultiCropWrapper with a synthetic backbone.

    backbone(x) = mean(x, axis=(2, 3)) @ W_b + b_b   (global-avg-pool + dense)
    head(f)     = f @ W_h + b_h                      (identity when head is None)

    Crops sharing a resolution form consecutive groups (torch.unique_consecutive
    + cumsum); each group is concatenated and runs through ONE fused pallas_call
    (pool + backbone + head), exactly mirroring the reference forward.
    """

    def __init__(self, w_backbone, b_backbone, w_head=None, b_head=None):
        self.c, self.d = w_backbone.shape
        if w_head is None:  # nn.Identity() head
            w_head = jnp.eye(self.d, dtype=jnp.float32)
            b_head = jnp.zeros((1, self.d), dtype=jnp.float32)
        self.out_dim = w_head.shape[1]
        self.dp = _round_up(self.d, LANE)
        self.op = _round_up(self.out_dim, LANE)
        # Weights stored bf16 (full-rate MXU operands, half the DMA bytes);
        # biases stay f32 and are added in f32 inside the kernel.
        self.wb_pad = _pad2d(w_backbone, self.c, self.dp).astype(jnp.bfloat16)
        self.wh_pad = _pad2d(w_head, self.dp, self.op).astype(jnp.bfloat16)
        self.bb_pad = _pad2d(jnp.asarray(b_backbone).reshape(1, -1), 1, self.dp)
        self.bh_pad = _pad2d(jnp.asarray(b_head).reshape(1, -1), 1, self.op)
        # TODO(synk): backbone and head are both affine here, so W_b @ W_h could be
        # pre-folded into a single matmul; kept as two MXU dots so a nonlinear head
        # MLP can drop in without changing the kernel structure.

    def _forward_group(self, crops):
        # One fused call per resolution group: concat the group's crops row-wise
        # (tiny [B, C, HW] copies) so the weights are fetched once per resolution.
        mats = []
        for crop in crops:
            n, c, h, w = crop.shape
            assert c == self.c
            mats.append(crop.reshape(n, c, h * w))        # free reshape (NCHW)
        x = mats[0] if len(mats) == 1 else jnp.concatenate(mats, axis=0)
        n = x.shape[0]
        n_pad = _round_up(n, 8)                           # sublane-dense row tiles
        if n_pad != n:
            x = jnp.pad(x, ((0, n_pad - n), (0, 0), (0, 0)))
        out = fused_pool_backbone_head(x, self.wb_pad, self.bb_pad,
                                       self.wh_pad, self.bh_pad)
        return out[:n]                                    # drop padded rows

    def __call__(self, x):
        if not isinstance(x, (list, tuple)):              # single-Tensor branch
            return self._forward_group([x])[:, : self.out_dim]

        # torch.cumsum(torch.unique_consecutive([w_i], return_counts=True)[1], 0)
        widths = [int(inp.shape[-1]) for inp in x]
        counts = []
        last = None
        for w in widths:
            if counts and w == last:
                counts[-1] += 1
            else:
                counts.append(1)
            last = w
        idx_crops = list(itertools.accumulate(counts))

        outs = []
        start_idx = 0
        for end_idx in idx_crops:
            outs.append(self._forward_group(list(x[start_idx:end_idx])))
            start_idx = end_idx
        output = outs[0] if len(outs) == 1 else jnp.concatenate(outs, axis=0)
        return output[:, : self.out_dim]                  # drop lane padding once


# --------------------------------- main -------------------------------------


if __name__ == "__main__":
    B = 2          # batch per crop
    C = 4          # channels
    D = 32         # backbone embedding dim
    OUT = 16       # head output dim
    GLOBAL_RES = 16
    LOCAL_RES = 8

    key = jax.random.PRNGKey(0)
    k_wb, k_bb, k_wh, k_bh, k_g0, k_g1, k_l0, k_l1 = jax.random.split(key, 8)

    w_backbone = jax.random.normal(k_wb, (C, D), dtype=jnp.float32) * 0.1
    b_backbone = jax.random.normal(k_bb, (1, D), dtype=jnp.float32) * 0.01
    w_head = jax.random.normal(k_wh, (D, OUT), dtype=jnp.float32) * 0.1
    b_head = jax.random.normal(k_bh, (1, OUT), dtype=jnp.float32) * 0.01

    model = MultiCropWrapper(w_backbone, b_backbone, w_head, b_head)

    # Multi-crop inputs (NCHW): 2 global crops @16x16, 2 local crops @8x8.
    crops = [
        jax.random.normal(k_g0, (B, C, GLOBAL_RES, GLOBAL_RES), dtype=jnp.float32),
        jax.random.normal(k_g1, (B, C, GLOBAL_RES, GLOBAL_RES), dtype=jnp.float32),
        jax.random.normal(k_l0, (B, C, LOCAL_RES, LOCAL_RES), dtype=jnp.float32),
        jax.random.normal(k_l1, (B, C, LOCAL_RES, LOCAL_RES), dtype=jnp.float32),
    ]

    out_multi = jax.block_until_ready(model(crops))
    assert out_multi.shape == (4 * B, OUT), out_multi.shape

    # Single-tensor path (isinstance(x, Tensor) branch).
    out_single = jax.block_until_ready(model(crops[0]))
    assert out_single.shape == (B, OUT), out_single.shape

    # Pure-JAX f32 reference mirroring the PyTorch forward (concat per resolution).
    def ref_backbone(x):
        return jnp.mean(x, axis=(2, 3)) @ w_backbone + b_backbone

    def ref_head(f):
        return f @ w_head + b_head

    ref_multi = ref_head(
        jnp.concatenate(
            [
                ref_backbone(jnp.concatenate(crops[0:2], axis=0)),
                ref_backbone(jnp.concatenate(crops[2:4], axis=0)),
            ],
            axis=0,
        )
    )
    ref_single = ref_head(ref_backbone(crops[0]))

    # bf16 dot operands (per perf review) vs. f32 reference -> slightly looser tol.
    atol, rtol = 2e-3, 2e-2
    assert jnp.allclose(out_multi, ref_multi, atol=atol, rtol=rtol), (
        float(jnp.max(jnp.abs(out_multi - ref_multi)))
    )
    assert jnp.allclose(out_single, ref_single, atol=atol, rtol=rtol)

    # head=None branch (nn.Identity) of the PyTorch module.
    ident = MultiCropWrapper(w_backbone, b_backbone, None, None)
    out_ident = jax.block_until_ready(ident(crops))
    ref_ident = jnp.concatenate(
        [
            ref_backbone(jnp.concatenate(crops[0:2], axis=0)),
            ref_backbone(jnp.concatenate(crops[2:4], axis=0)),
        ],
        axis=0,
    )
    assert out_ident.shape == (4 * B, D), out_ident.shape
    assert jnp.allclose(out_ident, ref_ident, atol=atol, rtol=rtol), (
        float(jnp.max(jnp.abs(out_ident - ref_ident)))
    )

    print("KERNEL_OK")
</pallas_src>

<mosaic_0001>
module attributes {stable_mosaic.version = 11 : i64} {
  func.func @kernel(%arg0: i32, %arg1: i32, %arg2: memref<8x4x256xf32, #tpu.memory_space<vmem>>, %arg3: memref<4x128xbf16, #tpu.memory_space<vmem>>, %arg4: memref<1x128xf32, #tpu.memory_space<vmem>>, %arg5: memref<128x128xbf16, #tpu.memory_space<vmem>>, %arg6: memref<1x128xf32, #tpu.memory_space<vmem>>, %arg7: memref<8x128xf32, #tpu.memory_space<vmem>>, %arg8: memref<8x4xf32, #tpu.memory_space<vmem>>) attributes {dimension_semantics = [#tpu.dimension_semantics<parallel>, #tpu.dimension_semantics<arbitrary>], iteration_bounds = array<i64: 1, 1>, scalar_prefetch = 0 : i64, scratch_operands = 1 : i64, tpu.core_type = #tpu.core_type<tc>, window_params = [{transform_indices = @transform_0, window_bounds = array<i64: 8, 4, 256>}, {pipeline_mode = #tpu.pipeline_mode<synchronous>, transform_indices = @transform_1, window_bounds = array<i64: 4, 128>}, {pipeline_mode = #tpu.pipeline_mode<synchronous>, transform_indices = @transform_2, window_bounds = array<i64: 1, 128>}, {pipeline_mode = #tpu.pipeline_mode<synchronous>, transform_indices = @transform_3, window_bounds = array<i64: 128, 128>}, {pipeline_mode = #tpu.pipeline_mode<synchronous>, transform_indices = @transform_4, window_bounds = array<i64: 1, 128>}, {transform_indices = @transform_5, window_bounds = array<i64: 8, 128>}]} {
    %c0_i32 = arith.constant 0 : i32
    %0 = arith.cmpi eq, %arg1, %c0_i32 : i32
    %1 = arith.extui %0 : i1 to i32
    %c0_i32_0 = arith.constant 0 : i32
    %2 = arith.cmpi ne, %1, %c0_i32_0 : i32
    scf.if %2 {
      %cst_9 = arith.constant 0.000000e+00 : f32
      %11 = vector.broadcast %cst_9 : f32 to vector<8x4xf32>
      %c0_10 = arith.constant 0 : index
      %c0_11 = arith.constant 0 : index
      %12 = vector.load %arg8[%c0_10, %c0_11] : memref<8x4xf32, #tpu.memory_space<vmem>>, vector<8x4xf32>
      tpu.vector_store %arg8[%c0_10, %c0_11], %11 {strides = array<i32>} : memref<8x4xf32, #tpu.memory_space<vmem>>, vector<8x4xf32>,
    } else {
    }
    %c0 = arith.constant 0 : index
    %c0_1 = arith.constant 0 : index
    %3 = vector.load %arg8[%c0, %c0_1] : memref<8x4xf32, #tpu.memory_space<vmem>>, vector<8x4xf32>
    %c0_2 = arith.constant 0 : index
    %c0_3 = arith.constant 0 : index
    %c0_4 = arith.constant 0 : index
    %4 = vector.load %arg2[%c0_2, %c0_3, %c0_4] : memref<8x4x256xf32, #tpu.memory_space<vmem>>, vector<8x4x256xf32>
    %cst = arith.constant dense<0.000000e+00> : vector<8x4xf32>
    %5 = vector.multi_reduction <add>, %4, %cst [2] : vector<8x4x256xf32> to vector<8x4xf32>
    %6 = arith.addf %3, %5 : vector<8x4xf32>
    %c0_5 = arith.constant 0 : index
    %c0_6 = arith.constant 0 : index
    %7 = vector.load %arg8[%c0_5, %c0_6] : memref<8x4xf32, #tpu.memory_space<vmem>>, vector<8x4xf32>
    tpu.vector_store %arg8[%c0_5, %c0_6], %6 {strides = array<i32>} : memref<8x4xf32, #tpu.memory_space<vmem>>, vector<8x4xf32>,
    %c0_i32_7 = arith.constant 0 : i32
    %8 = arith.cmpi eq, %arg1, %c0_i32_7 : i32
    %9 = arith.extui %8 : i1 to i32
    %c0_i32_8 = arith.constant 0 : i32
    %10 = arith.cmpi ne, %9, %c0_i32_8 : i32
    scf.if %10 {
      %c0_9 = arith.constant 0 : index
      %c0_10 = arith.constant 0 : index
      %11 = vector.load %arg8[%c0_9, %c0_10] : memref<8x4xf32, #tpu.memory_space<vmem>>, vector<8x4xf32>
      %cst_11 = arith.constant 3.906250e-03 : f32
      %12 = vector.broadcast %cst_11 : f32 to vector<8x4xf32>
      %13 = arith.mulf %11, %12 : vector<8x4xf32>
      %14 = arith.truncf %13 : vector<8x4xf32> to vector<8x4xbf16>
      %c0_12 = arith.constant 0 : index
      %c0_13 = arith.constant 0 : index
      %15 = vector.load %arg3[%c0_12, %c0_13] : memref<4x128xbf16, #tpu.memory_space<vmem>>, vector<4x128xbf16>
      %cst_14 = arith.constant dense<0.000000e+00> : vector<8x128xf32>
      %16 = tpu.matmul %14, %15, %cst_14 {dimension_numbers = #tpu.dot_dimension_numbers<[1], [0], [0], [1], [0, 0, 1, 1], [], []>} : vector<8x4xbf16>, vector<4x128xbf16>, vector<8x128xf32> -> vector<8x128xf32>
      %c0_15 = arith.constant 0 : index
      %c0_16 = arith.constant 0 : index
      %17 = vector.load %arg4[%c0_15, %c0_16] : memref<1x128xf32, #tpu.memory_space<vmem>>, vector<1x128xf32>
      %18 = vector.broadcast %17 : vector<1x128xf32> to vector<8x128xf32>
      %19 = arith.addf %16, %18 : vector<8x128xf32>
      %20 = arith.truncf %19 : vector<8x128xf32> to vector<8x128xbf16>
      %c0_17 = arith.constant 0 : index
      %c0_18 = arith.constant 0 : index
      %21 = vector.load %arg5[%c0_17, %c0_18] : memref<128x128xbf16, #tpu.memory_space<vmem>>, vector<128x128xbf16>
      %cst_19 = arith.constant dense<0.000000e+00> : vector<8x128xf32>
      %22 = tpu.matmul %20, %21, %cst_19 {dimension_numbers = #tpu.dot_dimension_numbers<[1], [0], [0], [1], [0, 0, 1, 1], [], []>} : vector<8x128xbf16>, vector<128x128xbf16>, vector<8x128xf32> -> vector<8x128xf32>
      %c0_20 = arith.constant 0 : index
      %c0_21 = arith.constant 0 : index
      %23 = vector.load %arg6[%c0_20, %c0_21] : memref<1x128xf32, #tpu.memory_space<vmem>>, vector<1x128xf32>
      %24 = vector.broadcast %23 : vector<1x128xf32> to vector<8x128xf32>
      %25 = arith.addf %22, %24 : vector<8x128xf32>
      %c0_22 = arith.constant 0 : index
      %c0_23 = arith.constant 0 : index
      %26 = vector.load %arg7[%c0_22, %c0_23] : memref<8x128xf32, #tpu.memory_space<vmem>>, vector<8x128xf32>
      tpu.vector_store %arg7[%c0_22, %c0_23], %25 {strides = array<i32>} : memref<8x128xf32, #tpu.memory_space<vmem>>, vector<8x128xf32>,
    } else {
    }
    return
  }
  func.func @transform_0(%arg0: i32, %arg1: i32) -> (i32, i32, i32) {
    %c0_i32 = arith.constant 0 : i32
    %c0_i32_0 = arith.constant 0 : i32
    return %arg0, %c0_i32, %arg1 : i32, i32, i32
  }
  func.func @transform_1(%arg0: i32, %arg1: i32) -> (i32, i32) {
    %c0_i32 = arith.constant 0 : i32
    %c0_i32_0 = arith.constant 0 : i32
    %c0_i32_1 = arith.constant 0 : i32
    return %c0_i32, %c0_i32_0 : i32, i32
  }
  func.func @transform_2(%arg0: i32, %arg1: i32) -> (i32, i32) {
    %c0_i32 = arith.constant 0 : i32
    %c0_i32_0 = arith.constant 0 : i32
    %c0_i32_1 = arith.constant 0 : i32
    return %c0_i32, %c0_i32_0 : i32, i32
  }
  func.func @transform_3(%arg0: i32, %arg1: i32) -> (i32, i32) {
    %c0_i32 = arith.constant 0 : i32
    %c0_i32_0 = arith.constant 0 : i32
    %c0_i32_1 = arith.constant 0 : i32
    return %c0_i32, %c0_i32_0 : i32, i32
  }
  func.func @transform_4(%arg0: i32, %arg1: i32) -> (i32, i32) {
    %c0_i32 = arith.constant 0 : i32
    %c0_i32_0 = arith.constant 0 : i32
    %c0_i32_1 = arith.constant 0 : i32
    return %c0_i32, %c0_i32_0 : i32, i32
  }
  func.func @transform_5(%arg0: i32, %arg1: i32) -> (i32, i32) {
    %c0_i32 = arith.constant 0 : i32
    %c0_i32_0 = arith.constant 0 : i32
    return %arg0, %c0_i32 : i32, i32
  }
}

</mosaic_0001>

<llo_original>
// kernel: tpu_custom_call.1
$region0: #{tpu_custom_call.1}
  #allocation0 [shape = 'u32[]', space=smem, size = 0x4, offset = 0x4, fixed_abs, tag = 'smem constant byte address 0x4 - core index']
  #allocation1 [shape = 'u32[72,128]{1,0:T(1,128)}', space=vmem, size = 0x9000, scoped, tag = 'internal scratch']
  #allocation2 [shape = 'f32[8,4]{1,0:T(8,128)}', space=vmem, size = 0x1000, scoped, tag = 'scratch operand']
  %s0 = inlined_call_operand.hbm [shape: f32[8,4,256], index: 0, kind: input, shape index: {}]
  %s1 = inlined_call_operand.hbm [shape: bf16[4,128], index: 1, kind: input, shape index: {}]
  %s2 = inlined_call_operand.vmem [shape: f32[1,128], index: 2, kind: input, shape index: {}]
  %s3 = inlined_call_operand.hbm [shape: bf16[128,128], index: 3, kind: input, shape index: {}]
  %s4 = inlined_call_operand.vmem [shape: f32[1,128], index: 4, kind: input, shape index: {}]
  %s5 = inlined_call_operand.hbm [shape: f32[8,128], index: 5, kind: output, shape index: {}]
  %s6 = sld [smem:[#allocation0]]
  $region50: #{tpu_custom_call.1} parent=0
    _
  %s8 = ssub.s32 1, %s6
  %s9 = scalar_select 0, %s8, %s6
  $region1: #{tpu_custom_call.1} parent=0
    #allocation3 [shape = 'u8[32768]{0}', space=vmem, size = 0x8000, scoped, tag = 'input window, operand 0, single buffered']
    #allocation4 [shape = 's32[1]{0}', space=sflag, size = 0x4, scoped, tag = 'scoped memory for tpu_custom_call.1']
    #allocation5 [shape = 's32[1]{0}', space=sflag, size = 0x4, scoped, tag = 'scoped memory for tpu_custom_call.1']
    #allocation6 [shape = 'u8[1024]{0}', space=vmem, size = 0x400, scoped, tag = 'input window, operand 1, single buffered']
    #allocation7 [shape = 's32[1]{0}', space=sflag, size = 0x4, scoped, tag = 'scoped memory for tpu_custom_call.1']
    #allocation8 [shape = 'u8[32768]{0}', space=vmem, size = 0x8000, scoped, tag = 'input window, operand 3, single buffered']
    #allocation9 [shape = 'u8[4096]{0}', space=vmem, size = 0x1000, scoped, tag = 'output window, operand 0, single buffered']
    %10 = vsyncpa [#allocation4], 0
    %11 = vsyncpa [#allocation7], 0
    %12 = vsyncpa [#allocation5], 0
    // Predicated region
    $region2: #{tpu_custom_call.1} parent=1 // pred_check
      _
    $region3: #{tpu_custom_call.1} parent=1 // pred_check_branch
      %14 = sbr.rel (0) target = $region5
    $region4: #{tpu_custom_call.1} parent=1 // pred_region
      %16 = vsyncadd [#allocation4], 0
      %s17 = sshll.u32 %s0, 4
      %s18 = int_to_ptr.hbm [resolvable:$true] %s17
      %s19 = sshll.u32 [#allocation3], 4
      %s20 = int_to_ptr.vmem [resolvable:$true] %s19
      %25 = dma.hbm_to_vmem [thread:$0]  %s18, 1024, %s20, [#allocation4], 128, 128, 8
    $region5: #{tpu_custom_call.1} parent=1 // pred_fallthru
      _
    // Predicated region
    $region6: #{tpu_custom_call.1} parent=1 // pred_check
      _
    $region7: #{tpu_custom_call.1} parent=1 // pred_check_branch
      %27 = sbr.rel (0) target = $region9
    $region8: #{tpu_custom_call.1} parent=1 // pred_region
      %29 = vsyncadd [#allocation7], 0
      %s31 = sshll.u32 %s1, 4
      %s32 = int_to_ptr.hbm [resolvable:$true] %s31
      %s33 = sshll.u32 [#allocation6], 4
      %s34 = int_to_ptr.vmem [resolvable:$true] %s33
      %36 = dma.hbm_to_vmem [thread:$0]  %s32, 32, %s34, [#allocation7]
    $region9: #{tpu_custom_call.1} parent=1 // pred_fallthru
      _
    // Predicated region
    $region10: #{tpu_custom_call.1} parent=1 // pred_check
      _
    $region11: #{tpu_custom_call.1} parent=1 // pred_check_branch
      %38 = sbr.rel (0) target = $region13
    $region12: #{tpu_custom_call.1} parent=1 // pred_region
      _
    $region13: #{tpu_custom_call.1} parent=1 // pred_fallthru
      _
    // Predicated region
    $region14: #{tpu_custom_call.1} parent=1 // pred_check
      _
    $region15: #{tpu_custom_call.1} parent=1 // pred_check_branch
      %40 = sbr.rel (0) target = $region17
    $region16: #{tpu_custom_call.1} parent=1 // pred_region
      %42 = vsyncadd [#allocation7], 0
      %s43 = sshll.u32 %s3, 4
      %s44 = int_to_ptr.hbm [resolvable:$true] %s43
      %s45 = sshll.u32 [#allocation8], 4
      %s46 = int_to_ptr.vmem [resolvable:$true] %s45
      %51 = dma.hbm_to_vmem [thread:$0]  %s44, 1024, %s46, [#allocation7], 64, 64, 4
    $region17: #{tpu_custom_call.1} parent=1 // pred_fallthru
      _
    // Predicated region
    $region18: #{tpu_custom_call.1} parent=1 // pred_check
      _
    $region19: #{tpu_custom_call.1} parent=1 // pred_check_branch
      %53 = sbr.rel (0) target = $region21
    $region20: #{tpu_custom_call.1} parent=1 // pred_region
      _
    $region21: #{tpu_custom_call.1} parent=1 // pred_fallthru
      _
    // Predicated region
    $region22: #{tpu_custom_call.1} parent=1 // pred_check
      _
    $region23: #{tpu_custom_call.1} parent=1 // pred_check_branch
      %55 = sbr.rel (0) target = $region25
    $region24: #{tpu_custom_call.1} parent=1 // pred_region
      %57 = dma.done [#allocation4], 1024
    $region25: #{tpu_custom_call.1} parent=1 // pred_fallthru
      _
    // Predicated region
    $region26: #{tpu_custom_call.1} parent=1 // pred_check
      _
    $region27: #{tpu_custom_call.1} parent=1 // pred_check_branch
      %59 = sbr.rel (0) target = $region29
    $region28: #{tpu_custom_call.1} parent=1 // pred_region
      %61 = dma.done [#allocation7], 32
    $region29: #{tpu_custom_call.1} parent=1 // pred_fallthru
      _
    // Predicated region
    $region30: #{tpu_custom_call.1} parent=1 // pred_check
      _
    $region31: #{tpu_custom_call.1} parent=1 // pred_check_branch
      %63 = sbr.rel (0) target = $region33
    $region32: #{tpu_custom_call.1} parent=1 // pred_region
      %65 = dma.done [#allocation7], 1024
    $region33: #{tpu_custom_call.1} parent=1 // pred_fallthru
      _
    %p67 = scmp.eq.s32.totalorder 0, 0
    // Predicated region
    $region34: #{tpu_custom_call.1} parent=1 // pred_check
      %p68 = pneg %p67
    $region35: #{tpu_custom_call.1} parent=1 // pred_check_branch
      %70 = sbr.rel (%p68) target = $region37
    $region36: #{tpu_custom_call.1} parent=1 // pred_region
      %vm71 = vcmask 31744
      %72 = vst.msk [vmem:[#allocation2] sm:$0xff] %vm71, 0.0
    $region37: #{tpu_custom_call.1} parent=1 // pred_fallthru
      _
    %v73 = vld [vmem:[#allocation2] sm:$0xff]
    %v74 = vld [vmem:[#allocation3] sm:$0xff]
    %v75 = vld [vmem:[#allocation3 + $0x8] sm:$0xff]
    %v76 = vld [vmem:[#allocation3 + $0x10] sm:$0xff]
    %v77 = vld [vmem:[#allocation3 + $0x18] sm:$0xff]
    %v78 = vld [vmem:[#allocation3 + $0x20] sm:$0xff]
    %v79 = vld [vmem:[#allocation3 + $0x28] sm:$0xff]
    %v80 = vld [vmem:[#allocation3 + $0x30] sm:$0xff]
    %v81 = vld [vmem:[#allocation3 + $0x38] sm:$0xff]
    %90 = vst [vmem:[#allocation1] ss:$2 sm:$0xff] %v74
    %v91 = vld.sshfl [vmem:[#allocation1] sm:$0xff pattern:$0x75316420]
    %v92 = vld.sshfl [vmem:[#allocation1 + $0x8] sm:$0xff pattern:$0x75316420]
    %s93 = scalar_lea.vmem [#allocation1], 16
    %94 = vst [vmem:[%s93] ss:$2 sm:$0xff] %v75
    %v95 = vld.sshfl [vmem:[#allocation1 + $0x10] sm:$0xff pattern:$0x75316420]
    %v96 = vld.sshfl [vmem:[#allocation1 + $0x18] sm:$0xff pattern:$0x75316420]
    %s97 = scalar_lea.vmem [#allocation1], 32
    %98 = vst [vmem:[%s97] ss:$2 sm:$0xff] %v76
    %v99 = vld.sshfl [vmem:[#allocation1 + $0x20] sm:$0xff pattern:$0x75316420]
    %v100 = vld.sshfl [vmem:[#allocation1 + $0x28] sm:$0xff pattern:$0x75316420]
    %s101 = scalar_lea.vmem [#allocation1], 48
    %102 = vst [vmem:[%s101] ss:$2 sm:$0xff] %v77
    %v103 = vld.sshfl [vmem:[#allocation1 + $0x30] sm:$0xff pattern:$0x75316420]
    %v104 = vld.sshfl [vmem:[#allocation1 + $0x38] sm:$0xff pattern:$0x75316420]
    %105 = vst [vmem:[#allocation1] ss:$2 sm:$0xff] %v78
    %v106 = vld.sshfl [vmem:[#allocation1] sm:$0xff pattern:$0x75316420]
    %v107 = vld.sshfl [vmem:[#allocation1 + $0x8] sm:$0xff pattern:$0x75316420]
    %108 = vst [vmem:[%s93] ss:$2 sm:$0xff] %v79
    %v109 = vld.sshfl [vmem:[#allocation1 + $0x10] sm:$0xff pattern:$0x75316420]
    %v110 = vld.sshfl [vmem:[#allocation1 + $0x18] sm:$0xff pattern:$0x75316420]
    %111 = vst [vmem:[%s97] ss:$2 sm:$0xff] %v80
    %v112 = vld.sshfl [vmem:[#allocation1 + $0x20] sm:$0xff pattern:$0x75316420]
    %v113 = vld.sshfl [vmem:[#allocation1 + $0x28] sm:$0xff pattern:$0x75316420]
    %114 = vst [vmem:[%s101] ss:$2 sm:$0xff] %v81
    %v115 = vld.sshfl [vmem:[#allocation1 + $0x30] sm:$0xff pattern:$0x75316420]
    %v116 = vld.sshfl [vmem:[#allocation1 + $0x38] sm:$0xff pattern:$0x75316420]
    %vm133 = vcmask 1043456
    %v134 = vsel %vm133, %v91, 0.0
    %v135 = vsel %vm133, %v92, 0.0
    %v136 = vadd.f32 %v134, %v135
    %137 = vadd.xlane.f32.xlu0 %v136
    %v138 = vpop.xlane.xlu0 %137
    %v139 = vsel %vm133, %v95, 0.0
    %v140 = vsel %vm133, %v96, 0.0
    %v141 = vadd.f32 %v139, %v140
    %142 = vadd.xlane.f32.xlu0 %v141
    %v143 = vpop.xlane.xlu0 %142
    %v144 = vsel %vm133, %v99, 0.0
    %v145 = vsel %vm133, %v100, 0.0
    %v146 = vadd.f32 %v144, %v145
    %147 = vadd.xlane.f32.xlu0 %v146
    %v148 = vpop.xlane.xlu0 %147
    %v149 = vsel %vm133, %v103, 0.0
    %v150 = vsel %vm133, %v104, 0.0
    %v151 = vadd.f32 %v149, %v150
    %152 = vadd.xlane.f32.xlu0 %v151
    %v153 = vpop.xlane.xlu0 %152
    %v154 = vsel %vm133, %v106, 0.0
    %v155 = vsel %vm133, %v107, 0.0
    %v156 = vadd.f32 %v154, %v155
    %157 = vadd.xlane.f32.xlu0 %v156
    %v158 = vpop.xlane.xlu0 %157
    %v159 = vsel %vm133, %v109, 0.0
    %v160 = vsel %vm133, %v110, 0.0
    %v161 = vadd.f32 %v159, %v160
    %162 = vadd.xlane.f32.xlu0 %v161
    %v163 = vpop.xlane.xlu0 %162
    %v164 = vsel %vm133, %v112, 0.0
    %v165 = vsel %vm133, %v113, 0.0
    %v166 = vadd.f32 %v164, %v165
    %167 = vadd.xlane.f32.xlu0 %v166
    %v168 = vpop.xlane.xlu0 %167
    %v169 = vsel %vm133, %v115, 0.0
    %v170 = vsel %vm133, %v116, 0.0
    %v171 = vadd.f32 %v169, %v170
    %172 = vadd.xlane.f32.xlu0 %v171
    %v173 = vpop.xlane.xlu0 %172
    %v182 = vlaneseq
    %v183 = vand.u32 %v182, 127
    %v184 = vperm.slane %v138, %v183
    %v185 = vperm.slane %v143, %v183
    %v186 = vperm.slane %v148, %v183
    %v187 = vperm.slane %v153, %v183
    %v188 = vperm.slane %v158, %v183
    %v189 = vperm.slane %v163, %v183
    %v190 = vperm.slane %v168, %v183
    %v191 = vperm.slane %v173, %v183
    %vm192 = vcmask 1041409
    %v193 = vsel %vm192, %v185, %v184
    %vm194 = vcmask 1042434
    %v195 = vsel %vm194, %v186, %v193
    %vm196 = vcmask 1043459
    %v197 = vsel %vm196, %v187, %v195
    %vm198 = vcmask 1044484
    %v199 = vsel %vm198, %v188, %v197
    %vm200 = vcmask 1045509
    %v201 = vsel %vm200, %v189, %v199
    %vm202 = vcmask 1046534
    %v203 = vsel %vm202, %v190, %v201
    %vm204 = vcmask 1047559
    %v205 = vsel %vm204, %v191, %v203
    %v207 = vadd.f32 %v73, %v205
    %vm208 = vcmask 31744
    %209 = vst.msk [vmem:[#allocation2] sm:$0xff] %vm208, %v207
    // Predicated region
    $region38: #{tpu_custom_call.1} parent=1 // pred_check
      %p210 = pneg %p67
    $region39: #{tpu_custom_call.1} parent=1 // pred_check_branch
      %212 = sbr.rel (%p210) target = $region41
    $region40: #{tpu_custom_call.1} parent=1 // pred_region
      %v213 = vld [vmem:[#allocation2] sm:$0xff]
      %v214 = vmul.f32 %v213, 0.00390625
      %v215 = vpack.c.bf16 %v214, %v214
      %v216 = vld [vmem:[#allocation6] sm:$0x3]
      %v217 = vld [vmem:[%s2] sm:$0x1]
      %v219 = vperm.slane %v217, 0
      %v222 = vsel %vm208, %v215, 0
      %vm224 = vcmask 1041408
      %v226 = vsel %vm224, %v216, 0
      %228 = vmatpush.bf16.msra.mxu0 0
      %229 = vmatpush.bf16.msra.mxu0 0
      %230 = vmatpush.bf16.msra.mxu0 0
      %231 = vmatpush.bf16.msra.mxu0 0
      %232 = vmatpush.bf16.msra.mxu0 0
      %233 = vmatpush.bf16.msra.mxu0 0
      %234 = vmatpush.bf16.msra.mxu0 0
      %235 = vmatpush.bf16.msra.mxu0 %v226
      %236 = vmatmul.bf16.gmra.mxu0 %v222
      %v237 = vpop.f32.mrf.mxu0
      %v238 = vadd.f32 %v219, %v237
      %v239 = vpop.f32.mrf.mxu0
      %240 = vdwg.mxu0
      %v241 = vpack.c.bf16 %v238, %v238
      %v242 = vld [vmem:[#allocation8] sm:$0xf]
      %v243 = vld [vmem:[#allocation8 + $0x4] sm:$0xf]
      %v244 = vld [vmem:[#allocation8 + $0x8] sm:$0xf]
      %v245 = vld [vmem:[#allocation8 + $0xc] sm:$0xf]
      %v246 = vld [vmem:[#allocation8 + $0x10] sm:$0xf]
      %v247 = vld [vmem:[#allocation8 + $0x14] sm:$0xf]
      %v248 = vld [vmem:[#allocation8 + $0x18] sm:$0xf]
      %v249 = vld [vmem:[#allocation8 + $0x1c] sm:$0xf]
      %v250 = vld [vmem:[#allocation8 + $0x20] sm:$0xf]
      %v251 = vld [vmem:[#allocation8 + $0x24] sm:$0xf]
      %v252 = vld [vmem:[#allocation8 + $0x28] sm:$0xf]
      %v253 = vld [vmem:[#allocation8 + $0x2c] sm:$0xf]
      %v254 = vld [vmem:[#allocation8 + $0x30] sm:$0xf]
      %v255 = vld [vmem:[#allocation8 + $0x34] sm:$0xf]
      %v256 = vld [vmem:[#allocation8 + $0x38] sm:$0xf]
      %v257 = vld [vmem:[#allocation8 + $0x3c] sm:$0xf]
      %v258 = vld [vmem:[%s4] sm:$0x1]
      %v260 = vperm.slane %v258, 0
      %v278 = vunpack.c.l.b16 %v242
      %v279 = vunpack.c.l.b16 %v243
      %v280 = vunpack.c.l.b16 %v244
      %v281 = vunpack.c.l.b16 %v245
      %v282 = vunpack.c.l.b16 %v246
      %v283 = vunpack.c.l.b16 %v247
      %v284 = vunpack.c.l.b16 %v248
      %v285 = vunpack.c.l.b16 %v249
      %v286 = vunpack.c.l.b16 %v250
      %v287 = vunpack.c.l.b16 %v251
      %v288 = vunpack.c.l.b16 %v252
      %v289 = vunpack.c.l.b16 %v253
      %v290 = vunpack.c.l.b16 %v254
      %v291 = vunpack.c.l.b16 %v255
      %v292 = vunpack.c.l.b16 %v256
      %v293 = vunpack.c.l.b16 %v257
      %v294 = vpack.c.b16 %v279, %v278
      %v295 = vpack.c.b16 %v281, %v280
      %v296 = vpack.c.b16 %v283, %v282
      %v297 = vpack.c.b16 %v285, %v284
      %v298 = vpack.c.b16 %v287, %v286
      %v299 = vpack.c.b16 %v289, %v288
      %v300 = vpack.c.b16 %v291, %v290
      %v301 = vpack.c.b16 %v293, %v292
      %310 = vmatpush.bf16.msra.mxu0 %v301
      %311 = vmatpush.bf16.msra.mxu0 %v300
      %312 = vmatpush.bf16.msra.mxu0 %v299
      %313 = vmatpush.bf16.msra.mxu0 %v298
      %314 = vmatpush.bf16.msra.mxu0 %v297
      %315 = vmatpush.bf16.msra.mxu0 %v296
      %316 = vmatpush.bf16.msra.mxu0 %v295
      %317 = vmatpush.bf16.msra.mxu0 %v294
      %318 = vmatmul.bf16.gmra.mxu0 %v241
      %v319 = vpop.f32.mrf.mxu0
      %v320 = vadd.f32 %v260, %v319
      %v321 = vpop.f32.mrf.mxu0
      %322 = vdwg.mxu0
      %323 = vst [vmem:[#allocation9] sm:$0xff] %v320
    $region41: #{tpu_custom_call.1} parent=1 // pred_fallthru
      _
    // Predicated region
    $region42: #{tpu_custom_call.1} parent=1 // pred_check
      _
    $region43: #{tpu_custom_call.1} parent=1 // pred_check_branch
      %325 = sbr.rel (0) target = $region45
    $region44: #{tpu_custom_call.1} parent=1 // pred_region
      %327 = vsyncadd [#allocation5], 0
      %s329 = sshll.u32 [#allocation9], 4
      %s330 = int_to_ptr.vmem [resolvable:$true] %s329
      %s331 = sshll.u32 %s5, 4
      %s332 = int_to_ptr.hbm [resolvable:$true] %s331
      %334 = dma.vmem_to_hbm [thread:$0]  %s330, 128, %s332, [#allocation5]
    $region45: #{tpu_custom_call.1} parent=1 // pred_fallthru
      _
    // Predicated region
    $region46: #{tpu_custom_call.1} parent=1 // pred_check
      _
    $region47: #{tpu_custom_call.1} parent=1 // pred_check_branch
      %336 = sbr.rel (0) target = $region49
    $region48: #{tpu_custom_call.1} parent=1 // pred_region
      %338 = dma.done [#allocation5], 128
    $region49: #{tpu_custom_call.1} parent=1 // pred_fallthru
      _
    %339 = vsyncpa [#allocation4], 1
    %340 = vsyncpa [#allocation7], 1
    %341 = vsyncpa [#allocation5], 1

</llo_original>
